<compile_context>
chip_gen: v7x
topology: tpu7x:2x2x1
jax: 0.10.0
libtpu: 0.0.40
codegen_flags: <defaults>
</compile_context>

<pallas_src>
import functools

import jax
import jax.numpy as jnp
from jax.experimental import pallas as pl
from jax.experimental.pallas import tpu as pltpu


def _round_up(x, m):
    return ((x + m - 1) // m) * m


# ----------------------------- kernel bodies ------------------------------ #

def _neg_scaled_distances(ze, book, bk2, precision_q):
    """logits = -(|ze|^2 + |book|^2 - 2 ze.book^T) * precision_q.

    bk2 (= |book|^2, shape (1, BOOK)) is loop-invariant and precomputed in the
    wrapper; the cross term contracts the last dims of both operands so the
    codebook is consumed in its native (BOOK, DIM) layout (no transpose).
    """
    ze2 = jnp.sum(ze * ze, axis=-1, keepdims=True)                     # (tn, 1)
    cross = jax.lax.dot_general(
        ze, book,
        dimension_numbers=(((1,), (1,)), ((), ())),
        preferred_element_type=jnp.float32)                            # (tn, BOOK)
    return (2.0 * cross - ze2 - bk2) * precision_q


def _vq_train_kernel(params_ref, ze_ref, bk2_ref, book_ref, noise_ref,
                     logits_ref, zq_ref):
    # params_ref (SMEM): [precision_q, 1/temperature]  (precomputed on host)
    precision_q = params_ref[0]
    inv_temperature = params_ref[1]

    ze = ze_ref[...]                       # (tn, DIM) f32
    book = book_ref[...]                   # (BOOK, DIM) f32

    logits = _neg_scaled_distances(ze, book, bk2_ref[...], precision_q)
    logits_ref[...] = logits

    # Gumbel-softmax; the Gumbel noise is generated by the wrapper and
    # streamed in, so only one exp per element remains on the EUP.
    y = (logits + noise_ref[...]) * inv_temperature
    y = y - jnp.max(y, axis=-1, keepdims=True)
    e = jnp.exp(y)
    inv_sum = 1.0 / jnp.sum(e, axis=-1, keepdims=True)   # (tn,1) divide only
    encodings = e * inv_sum

    zq_ref[...] = jnp.dot(encodings, book, preferred_element_type=jnp.float32)


def _vq_eval_kernel(params_ref, ze_ref, bk2_ref, book_ref, logits_ref, zq_ref):
    precision_q = params_ref[0]

    ze = ze_ref[...]
    book = book_ref[...]

    logits = _neg_scaled_distances(ze, book, bk2_ref[...], precision_q)
    logits_ref[...] = logits

    # argmax one-hot (first maximal index, matching torch.argmax semantics).
    book_size = logits.shape[-1]
    row_max = jnp.max(logits, axis=-1, keepdims=True)
    col = jax.lax.broadcasted_iota(jnp.int32, logits.shape, 1)
    cand = jnp.where(logits == row_max, col, jnp.int32(book_size))
    idx = jnp.min(cand, axis=-1, keepdims=True)
    onehot = (col == idx).astype(jnp.float32)

    zq_ref[...] = jnp.dot(onehot, book, preferred_element_type=jnp.float32)


# ------------------------------- wrapper ----------------------------------- #

def _choose_tile(n, dim, book_size, is_train):
    """Pick the row-tile size: large (up to 512) but within a conservative
    VMEM budget so double-buffered tiles fit on every TPU generation."""
    bytes_per_row = 4 * (2 * dim + (3 if is_train else 2) * book_size)
    book_resident = 2 * 4 * book_size * (dim + 1)
    budget = 24 * 1024 * 1024 - book_resident
    max_rows = max(8, budget // (2 * bytes_per_row))
    tn = min(512, int(max_rows), _round_up(n, 8))
    return max(8, (tn // 8) * 8)


def _gumbel_noise(seed, n, book_size, eps=1e-10):
    u = jax.random.uniform(jax.random.PRNGKey(seed), (n, book_size), jnp.float32)
    return -jnp.log(-jnp.log(u + eps) + eps)


@functools.partial(jax.jit, static_argnames=("is_train",))
def gaussian_vq_forward(ze, book, log_param_q, temperature, is_train, seed):
    """Pallas implementation of GaussianVectorQuantizer.forward.

    ze:   (B, NPTS, DIM) f32
    book: (BOOK_SIZE, DIM) f32
    Returns (zq (B,NPTS,DIM), precision_q scalar, logits (B,NPTS,BOOK_SIZE)).
    """
    b, npts, dim = ze.shape
    book_size = book.shape[0]
    n = b * npts

    ze_flat = ze.reshape(n, dim).astype(jnp.float32)
    book_f32 = book.astype(jnp.float32)

    precision_q = 0.5 / jnp.maximum(
        jnp.exp(jnp.asarray(log_param_q, jnp.float32)), 1e-10)
    inv_temperature = 1.0 / jnp.asarray(temperature, jnp.float32)
    params = jnp.stack([precision_q, inv_temperature])

    bk2 = jnp.sum(book_f32 * book_f32, axis=-1)[None, :]     # (1, BOOK)

    tn = _choose_tile(n, dim, book_size, is_train)
    n_pad = _round_up(n, tn)

    noise = None
    if is_train:
        noise = _gumbel_noise(seed, n, book_size)

    if n_pad != n:
        ze_flat = jnp.pad(ze_flat, ((0, n_pad - n), (0, 0)))
        if is_train:
            noise = jnp.pad(noise, ((0, n_pad - n), (0, 0)))

    grid = (n_pad // tn,)
    ze_spec = pl.BlockSpec((tn, dim), lambda i: (i, 0))
    bk2_spec = pl.BlockSpec((1, book_size), lambda i: (0, 0))
    book_spec = pl.BlockSpec((book_size, dim), lambda i: (0, 0))
    noise_spec = pl.BlockSpec((tn, book_size), lambda i: (i, 0))
    logits_spec = pl.BlockSpec((tn, book_size), lambda i: (i, 0))
    zq_spec = pl.BlockSpec((tn, dim), lambda i: (i, 0))
    smem_spec = pl.BlockSpec(memory_space=pltpu.SMEM)

    out_shape = (jax.ShapeDtypeStruct((n_pad, book_size), jnp.float32),
                 jax.ShapeDtypeStruct((n_pad, dim), jnp.float32))
    cparams = pltpu.CompilerParams(
        dimension_semantics=("parallel",),          # independent tiles -> both v7x TCs
        vmem_limit_bytes=48 * 1024 * 1024)

    if is_train:
        logits, zq = pl.pallas_call(
            _vq_train_kernel,
            out_shape=out_shape,
            grid=grid,
            in_specs=[smem_spec, ze_spec, bk2_spec, book_spec, noise_spec],
            out_specs=(logits_spec, zq_spec),
            compiler_params=cparams,
        )(params, ze_flat, bk2, book_f32, noise)
    else:
        logits, zq = pl.pallas_call(
            _vq_eval_kernel,
            out_shape=out_shape,
            grid=grid,
            in_specs=[smem_spec, ze_spec, bk2_spec, book_spec],
            out_specs=(logits_spec, zq_spec),
            compiler_params=cparams,
        )(params, ze_flat, bk2, book_f32)

    # TODO(synk): with small BOOK_SIZE/DIM (<128 lanes) the stores are masked;
    # a lane-packed output layout would need an in-kernel sublane->lane
    # relayout which is not applied here.
    logits = logits[:n].reshape(b, npts, book_size)
    zq = zq[:n].reshape(b, npts, dim)
    return zq, precision_q, logits


# --------------------------- pure-JAX references ---------------------------- #

def _reference_logits(ze, book, log_param_q):
    b, npts, dim = ze.shape
    precision_q = 0.5 / jnp.maximum(jnp.exp(log_param_q), 1e-10)
    ze_flat = ze.reshape(-1, dim)
    cross = jnp.matmul(ze_flat, book.T, precision=jax.lax.Precision.HIGHEST)
    dist = (jnp.sum(ze_flat ** 2, axis=-1, keepdims=True)
            + jnp.sum(book ** 2, axis=-1) - 2.0 * cross)
    return -dist * precision_q, precision_q


# ---------------------------------- main ----------------------------------- #

if __name__ == "__main__":
    # Synthetic config: book_size=16, latent_dim=32, latent_size=(4, 4) -> npts=16
    B, BOOK_SIZE, DIM, NPTS = 2, 16, 32, 16

    key = jax.random.PRNGKey(0)
    k_ze, k_book = jax.random.split(key)
    ze = jax.random.normal(k_ze, (B, NPTS, DIM), jnp.float32)
    book = jax.random.normal(k_book, (BOOK_SIZE, DIM), jnp.float32)
    log_param_q = jnp.float32(-1.0)
    temperature = jnp.float32(0.5)

    logits_r, prec_r = _reference_logits(ze, book, log_param_q)
    logits_r3 = logits_r.reshape(B, NPTS, BOOK_SIZE)

    # ---- Eval path (deterministic) ----
    zq_e, prec_e, logits_e = gaussian_vq_forward(
        ze, book, log_param_q, temperature, is_train=False, seed=0)
    jax.block_until_ready((zq_e, prec_e, logits_e))
    assert jnp.allclose(logits_e, logits_r3, atol=2e-1, rtol=2e-2)
    assert jnp.allclose(prec_e, prec_r)
    # zq must be the codebook row selected by the kernel's own argmax.
    idx_e = jnp.argmax(logits_e.reshape(-1, BOOK_SIZE), axis=-1)
    assert jnp.allclose(zq_e.reshape(-1, DIM), book[idx_e], atol=5e-2, rtol=2e-2)

    # ---- Train path (gumbel-softmax; noise regenerated identically) ----
    zq_t, prec_t, logits_t = gaussian_vq_forward(
        ze, book, log_param_q, temperature, is_train=True, seed=1234)
    jax.block_until_ready((zq_t, prec_t, logits_t))
    assert zq_t.shape == (B, NPTS, DIM)
    assert logits_t.shape == (B, NPTS, BOOK_SIZE)
    assert jnp.allclose(logits_t, logits_r3, atol=2e-1, rtol=2e-2)
    g = _gumbel_noise(1234, B * NPTS, BOOK_SIZE)
    enc = jax.nn.softmax(
        (logits_t.reshape(-1, BOOK_SIZE) + g) / temperature, axis=-1)
    zq_expect = jnp.matmul(enc, book,
                           precision=jax.lax.Precision.HIGHEST).reshape(B, NPTS, DIM)
    assert jnp.allclose(zq_t, zq_expect, atol=5e-2, rtol=2e-2)
    assert jnp.allclose(prec_t, prec_r)

    print("KERNEL_OK")
</pallas_src>

<mosaic_0001>
module attributes {stable_mosaic.version = 11 : i64} {
  func.func @_vq_eval_kernel(%arg0: i32, %arg1: memref<2xf32, #tpu.memory_space<smem>>, %arg2: memref<32x32xf32, #tpu.memory_space<vmem>>, %arg3: memref<1x16xf32, #tpu.memory_space<vmem>>, %arg4: memref<16x32xf32, #tpu.memory_space<vmem>>, %arg5: memref<32x16xf32, #tpu.memory_space<vmem>>, %arg6: memref<32x32xf32, #tpu.memory_space<vmem>>) attributes {dimension_semantics = [#tpu.dimension_semantics<parallel>], iteration_bounds = array<i64: 1>, scalar_prefetch = 0 : i64, scratch_operands = 0 : i64, tpu.core_type = #tpu.core_type<tc>, window_params = [{transform_indices = @transform_0, window_bounds = array<i64: 2>}, {transform_indices = @transform_1, window_bounds = array<i64: 32, 32>}, {pipeline_mode = #tpu.pipeline_mode<synchronous>, transform_indices = @transform_2, window_bounds = array<i64: 1, 16>}, {pipeline_mode = #tpu.pipeline_mode<synchronous>, transform_indices = @transform_3, window_bounds = array<i64: 16, 32>}, {transform_indices = @transform_4, window_bounds = array<i64: 32, 16>}, {transform_indices = @transform_5, window_bounds = array<i64: 32, 32>}]} {
    %c0 = arith.constant 0 : index
    %0 = memref.load %arg1[%c0] : memref<2xf32, #tpu.memory_space<smem>>
    %c0_0 = arith.constant 0 : index
    %c0_1 = arith.constant 0 : index
    %1 = vector.load %arg2[%c0_0, %c0_1] : memref<32x32xf32, #tpu.memory_space<vmem>>, vector<32x32xf32>
    %c0_2 = arith.constant 0 : index
    %c0_3 = arith.constant 0 : index
    %2 = vector.load %arg4[%c0_2, %c0_3] : memref<16x32xf32, #tpu.memory_space<vmem>>, vector<16x32xf32>
    %c0_4 = arith.constant 0 : index
    %c0_5 = arith.constant 0 : index
    %3 = vector.load %arg3[%c0_4, %c0_5] : memref<1x16xf32, #tpu.memory_space<vmem>>, vector<1x16xf32>
    %4 = arith.mulf %1, %1 : vector<32x32xf32>
    %cst = arith.constant dense<0.000000e+00> : vector<32xf32>
    %5 = vector.multi_reduction <add>, %4, %cst [1] : vector<32x32xf32> to vector<32xf32>
    %6 = vector.shape_cast %5 : vector<32xf32> to vector<32x1xf32>
    %cst_6 = arith.constant dense<0.000000e+00> : vector<32x16xf32>
    %7 = tpu.matmul %1, %2, %cst_6 {dimension_numbers = #tpu.dot_dimension_numbers<[1], [1], [0], [0], [0, 0, 1, 0], [], []>} : vector<32x32xf32>, vector<16x32xf32>, vector<32x16xf32> -> vector<32x16xf32>
    %cst_7 = arith.constant 2.000000e+00 : f32
    %8 = vector.broadcast %cst_7 : f32 to vector<32x16xf32>
    %9 = arith.mulf %8, %7 : vector<32x16xf32>
    %10 = vector.broadcast %6 : vector<32x1xf32> to vector<32x16xf32>
    %11 = arith.subf %9, %10 : vector<32x16xf32>
    %12 = vector.broadcast %3 : vector<1x16xf32> to vector<32x16xf32>
    %13 = arith.subf %11, %12 : vector<32x16xf32>
    %14 = vector.broadcast %0 : f32 to vector<32x16xf32>
    %15 = arith.mulf %13, %14 : vector<32x16xf32>
    %c0_8 = arith.constant 0 : index
    %c0_9 = arith.constant 0 : index
    %16 = vector.load %arg5[%c0_8, %c0_9] : memref<32x16xf32, #tpu.memory_space<vmem>>, vector<32x16xf32>
    tpu.vector_store %arg5[%c0_8, %c0_9], %15 {strides = array<i32>} : memref<32x16xf32, #tpu.memory_space<vmem>>, vector<32x16xf32>,
    %cst_10 = arith.constant dense<0xFF800000> : vector<32xf32>
    %17 = vector.multi_reduction <maximumf>, %15, %cst_10 [1] : vector<32x16xf32> to vector<32xf32>
    %18 = vector.shape_cast %17 : vector<32xf32> to vector<32x1xf32>
    %19 = tpu.iota {dimensions = array<i32: 1>} : vector<32x16xi32>
    %20 = vector.broadcast %18 : vector<32x1xf32> to vector<32x16xf32>
    %21 = arith.cmpf oeq, %15, %20 : vector<32x16xf32>
    %c16_i32 = arith.constant 16 : i32
    %22 = vector.broadcast %c16_i32 : i32 to vector<32x16xi32>
    %23 = arith.select %21, %19, %22 : vector<32x16xi1>, vector<32x16xi32>
    %cst_11 = arith.constant dense<2147483647> : vector<32xi32>
    %24 = vector.multi_reduction <minsi>, %23, %cst_11 [1] : vector<32x16xi32> to vector<32xi32>
    %25 = vector.shape_cast %24 : vector<32xi32> to vector<32x1xi32>
    %26 = vector.broadcast %25 : vector<32x1xi32> to vector<32x16xi32>
    %27 = arith.cmpi eq, %19, %26 : vector<32x16xi32>
    %28 = arith.extui %27 : vector<32x16xi1> to vector<32x16xi32>
    %29 = arith.sitofp %28 : vector<32x16xi32> to vector<32x16xf32>
    %cst_12 = arith.constant dense<0.000000e+00> : vector<32x32xf32>
    %30 = tpu.matmul %29, %2, %cst_12 {dimension_numbers = #tpu.dot_dimension_numbers<[1], [0], [0], [1], [0, 0, 1, 1], [], []>} : vector<32x16xf32>, vector<16x32xf32>, vector<32x32xf32> -> vector<32x32xf32>
    %c0_13 = arith.constant 0 : index
    %c0_14 = arith.constant 0 : index
    %31 = vector.load %arg6[%c0_13, %c0_14] : memref<32x32xf32, #tpu.memory_space<vmem>>, vector<32x32xf32>
    tpu.vector_store %arg6[%c0_13, %c0_14], %30 {strides = array<i32>} : memref<32x32xf32, #tpu.memory_space<vmem>>, vector<32x32xf32>,
    return
  }
  func.func @transform_0(%arg0: i32) -> i32 {
    %c0_i32 = arith.constant 0 : i32
    %c0_i32_0 = arith.constant 0 : i32
    return %c0_i32 : i32
  }
  func.func @transform_1(%arg0: i32) -> (i32, i32) {
    %c0_i32 = arith.constant 0 : i32
    %c0_i32_0 = arith.constant 0 : i32
    return %arg0, %c0_i32 : i32, i32
  }
  func.func @transform_2(%arg0: i32) -> (i32, i32) {
    %c0_i32 = arith.constant 0 : i32
    %c0_i32_0 = arith.constant 0 : i32
    %c0_i32_1 = arith.constant 0 : i32
    return %c0_i32, %c0_i32_0 : i32, i32
  }
  func.func @transform_3(%arg0: i32) -> (i32, i32) {
    %c0_i32 = arith.constant 0 : i32
    %c0_i32_0 = arith.constant 0 : i32
    %c0_i32_1 = arith.constant 0 : i32
    return %c0_i32, %c0_i32_0 : i32, i32
  }
  func.func @transform_4(%arg0: i32) -> (i32, i32) {
    %c0_i32 = arith.constant 0 : i32
    %c0_i32_0 = arith.constant 0 : i32
    return %arg0, %c0_i32 : i32, i32
  }
  func.func @transform_5(%arg0: i32) -> (i32, i32) {
    %c0_i32 = arith.constant 0 : i32
    %c0_i32_0 = arith.constant 0 : i32
    return %arg0, %c0_i32 : i32, i32
  }
}

</mosaic_0001>

<llo_original>
// kernel: gaussian_vq_forward.1
$region0: #{gaussian_vq_forward.1}
  #allocation0 [shape = 'u32[]', space=smem, size = 0x4, offset = 0x4, fixed_abs, tag = 'smem constant byte address 0x4 - core index']
  #allocation1 [shape = 'u32[144,128]{1,0:T(1,128)}', space=vmem, size = 0x12000, scoped, tag = 'internal scratch']
  %s0 = inlined_call_operand.vmem [shape: f32[2], index: 0, kind: input, shape index: {}]
  %s1 = inlined_call_operand.vmem [shape: f32[32,32], index: 1, kind: input, shape index: {}]
  %s2 = inlined_call_operand.vmem [shape: f32[1,16], index: 2, kind: input, shape index: {}]
  %s3 = inlined_call_operand.vmem [shape: f32[16,32], index: 3, kind: input, shape index: {}]
  %s4 = inlined_call_operand.hbm [shape: f32[32,16], index: 4, kind: output, shape index: {0}]
  %s5 = inlined_call_operand.hbm [shape: f32[32,32], index: 5, kind: output, shape index: {1}]
  %6 = xla_tuple %s4, %s5
  %s7 = sld [smem:[#allocation0]]
  $region38: #{gaussian_vq_forward.1} parent=0
    _
  %s9 = ssub.s32 1, %s7
  %s10 = scalar_select 0, %s9, %s7
  $region1: #{gaussian_vq_forward.1} parent=0
    #allocation2 [shape = 'u8[512]{0}', space=smem, size = 0x200, scoped, tag = 'input window, operand 0, single buffered']
    #allocation3 [shape = 's32[1]{0}', space=sflag, size = 0x4, scoped, tag = 'scoped memory for gaussian_vq_forward.1']
    #allocation4 [shape = 's32[1]{0}', space=sflag, size = 0x4, scoped, tag = 'scoped memory for gaussian_vq_forward.1']
    #allocation5 [shape = 'u8[16384]{0}', space=vmem, size = 0x4000, scoped, tag = 'output window, operand 0, single buffered']
    #allocation6 [shape = 'u8[16384]{0}', space=vmem, size = 0x4000, scoped, tag = 'output window, operand 1, single buffered']
    #allocation7 [shape = 's32[1]{0}', space=sflag, size = 0x4, scoped, tag = 'scoped memory for gaussian_vq_forward.1']
    %11 = vsyncpa [#allocation4], 0
    %12 = vsyncpa [#allocation3], 0
    %13 = vsyncpa [#allocation7], 0
    // Predicated region
    $region2: #{gaussian_vq_forward.1} parent=1 // pred_check
      _
    $region3: #{gaussian_vq_forward.1} parent=1 // pred_check_branch
      %15 = sbr.rel (0) target = $region5
    $region4: #{gaussian_vq_forward.1} parent=1 // pred_region
      %s17 = ssub.s32 16, 16
      %18 = vsyncadd [#allocation4], %s17
      %s20 = sshll.u32 %s0, 4
      %s21 = int_to_ptr.vmem [resolvable:$true] %s20
      %23 = dma.vmem_to_smem %s21, 16, [#allocation2], [#allocation4]
    $region5: #{gaussian_vq_forward.1} parent=1 // pred_fallthru
      _
    // Predicated region
    $region6: #{gaussian_vq_forward.1} parent=1 // pred_check
      _
    $region7: #{gaussian_vq_forward.1} parent=1 // pred_check_branch
      %25 = sbr.rel (0) target = $region9
    $region8: #{gaussian_vq_forward.1} parent=1 // pred_region
      _
    $region9: #{gaussian_vq_forward.1} parent=1 // pred_fallthru
      _
    // Predicated region
    $region10: #{gaussian_vq_forward.1} parent=1 // pred_check
      _
    $region11: #{gaussian_vq_forward.1} parent=1 // pred_check_branch
      %27 = sbr.rel (0) target = $region13
    $region12: #{gaussian_vq_forward.1} parent=1 // pred_region
      _
    $region13: #{gaussian_vq_forward.1} parent=1 // pred_fallthru
      _
    // Predicated region
    $region14: #{gaussian_vq_forward.1} parent=1 // pred_check
      _
    $region15: #{gaussian_vq_forward.1} parent=1 // pred_check_branch
      %29 = sbr.rel (0) target = $region17
    $region16: #{gaussian_vq_forward.1} parent=1 // pred_region
      _
    $region17: #{gaussian_vq_forward.1} parent=1 // pred_fallthru
      _
    // Predicated region
    $region18: #{gaussian_vq_forward.1} parent=1 // pred_check
      _
    $region19: #{gaussian_vq_forward.1} parent=1 // pred_check_branch
      %31 = sbr.rel (0) target = $region21
    $region20: #{gaussian_vq_forward.1} parent=1 // pred_region
      %32 = dma.done [#allocation4], 16
    $region21: #{gaussian_vq_forward.1} parent=1 // pred_fallthru
      _
    %33 = sfence
    %s34 = sld [smem:[#allocation2]]
    %v35 = vld [vmem:[%s1] sm:$0xff]
    %v36 = vld [vmem:[%s1 + $0x8] sm:$0xff]
    %v37 = vld [vmem:[%s1 + $0x10] sm:$0xff]
    %v38 = vld [vmem:[%s1 + $0x18] sm:$0xff]
    %v39 = vld [vmem:[%s3] sm:$0xff]
    %v40 = vld [vmem:[%s3 + $0x8] sm:$0xff]
    %v41 = vld [vmem:[%s2] sm:$0x1]
    %v42 = vmul.f32 %v35, %v35
    %v43 = vmul.f32 %v36, %v36
    %v44 = vmul.f32 %v37, %v37
    %v45 = vmul.f32 %v38, %v38
    %vm46 = vcmask 261120
    %v47 = vsel %vm46, %v42, 0.0
    %48 = vadd.xlane.f32.xlu0 %v47
    %v49 = vpop.xlane.xlu0 %48
    %v50 = vsel %vm46, %v43, 0.0
    %51 = vadd.xlane.f32.xlu0 %v50
    %v52 = vpop.xlane.xlu0 %51
    %v53 = vsel %vm46, %v44, 0.0
    %54 = vadd.xlane.f32.xlu0 %v53
    %v55 = vpop.xlane.xlu0 %54
    %v56 = vsel %vm46, %v45, 0.0
    %57 = vadd.xlane.f32.xlu0 %v56
    %v58 = vpop.xlane.xlu0 %57
    %v60 = vsel %vm46, %v35, 0
    %v63 = vsel %vm46, %v36, 0
    %v66 = vsel %vm46, %v37, 0
    %v69 = vsel %vm46, %v38, 0
    %v72 = vsel %vm46, %v39, 0
    %v75 = vsel %vm46, %v40, 0
    %77 = vmatprep.subr.mxu0 0.0
    %78 = vmatpush1.xpose.msra.mxu0 %v72
    %79 = vmatprep.subr.mxu0 0.0
    %80 = vmatpush1.xpose.msra.mxu0 %v75
    %81 = vmatprep.subr.mxu0 0.0
    %82 = vmatpush1.xpose.msra.mxu0 0.0
    %83 = vmatprep.subr.mxu0 0.0
    %84 = vmatpush1.xpose.msra.mxu0 0.0
    %85 = vmatprep.subr.mxu0 0.0
    %86 = vmatpush1.xpose.msra.mxu0 0.0
    %87 = vmatprep.subr.mxu0 0.0
    %88 = vmatpush1.xpose.msra.mxu0 0.0
    %89 = vmatprep.subr.mxu0 0.0
    %90 = vmatpush1.xpose.msra.mxu0 0.0
    %91 = vmatprep.subr.mxu0 0.0
    %92 = vmatpush1.xpose.msra.mxu0 0.0
    %93 = vmatprep.subr.mxu0 0.0
    %94 = vmatpush1.xpose.msra.mxu0 0.0
    %95 = vmatprep.subr.mxu0 0.0
    %96 = vmatpush1.xpose.msra.mxu0 0.0
    %97 = vmatprep.subr.mxu0 0.0
    %98 = vmatpush1.xpose.msra.mxu0 0.0
    %99 = vmatprep.subr.mxu0 0.0
    %100 = vmatpush1.xpose.msra.mxu0 0.0
    %101 = vmatprep.subr.mxu0 0.0
    %102 = vmatpush1.xpose.msra.mxu0 0.0
    %103 = vmatprep.subr.mxu0 0.0
    %104 = vmatpush1.xpose.msra.mxu0 0.0
    %105 = vmatprep.subr.mxu0 0.0
    %106 = vmatpush1.xpose.msra.mxu0 0.0
    %107 = vmatprep.subr.mxu0 0.0
    %108 = vmatpush1.xpose.msra.mxu0 0.0
    %109 = vmatprep.subr.mxu0 0.0
    %110 = vmatpush1.xpose.msra.mxu0 0.0
    %111 = vmatprep.subr.mxu0 0.0
    %112 = vmatpush1.xpose.msra.mxu0 0.0
    %113 = vmatprep.subr.mxu0 0.0
    %114 = vmatpush1.xpose.msra.mxu0 0.0
    %115 = vmatprep.subr.mxu0 0.0
    %116 = vmatpush1.xpose.msra.mxu0 0.0
    %117 = vmatprep.subr.mxu0 0.0
    %118 = vmatpush1.xpose.msra.mxu0 0.0
    %119 = vmatprep.subr.mxu0 0.0
    %120 = vmatpush1.xpose.msra.mxu0 0.0
    %121 = vmatprep.subr.mxu0 0.0
    %122 = vmatpush1.xpose.msra.mxu0 0.0
    %123 = vmatprep.subr.mxu0 0.0
    %124 = vmatpush1.xpose.msra.mxu0 0.0
    %125 = vmatprep.subr.mxu0 0.0
    %126 = vmatpush1.xpose.msra.mxu0 0.0
    %127 = vmatprep.subr.mxu0 0.0
    %128 = vmatpush1.xpose.msra.mxu0 0.0
    %129 = vmatprep.subr.mxu0 0.0
    %130 = vmatpush1.xpose.msra.mxu0 0.0
    %131 = vmatprep.subr.mxu0 0.0
    %132 = vmatpush1.xpose.msra.mxu0 0.0
    %133 = vmatprep.subr.mxu0 0.0
    %134 = vmatpush1.xpose.msra.mxu0 0.0
    %135 = vmatprep.subr.mxu0 0.0
    %136 = vmatpush1.xpose.msra.mxu0 0.0
    %137 = vmatprep.subr.mxu0 0.0
    %138 = vmatpush1.xpose.msra.mxu0 0.0
    %139 = vmatprep.subr.mxu0 0.0
    %140 = vmatpush1.xpose.msra.mxu0 0.0
    %141 = vmatprep.mubr.f32.mxu0 0.0
    %142 = vmatmul.mubr.f32.gmra.mrb[0].mxu0 %v60
    %v143 = vpop.f32.mrb[0].mxu0
    %v144 = vadd.f32 0.0, %v143
    %v145 = vpop.f32.mrb[0].mxu0
    %146 = vmatprep.mubr.f32.mxu0 0.0
    %147 = vmatmul.mubr.f32.gmra.mrb[0].mxu0 %v63
    %v148 = vpop.f32.mrb[0].mxu0
    %v149 = vadd.f32 0.0, %v148
    %v150 = vpop.f32.mrb[0].mxu0
    %151 = vmatprep.mubr.f32.mxu0 0.0
    %152 = vmatmul.mubr.f32.gmra.mrb[0].mxu0 %v66
    %v153 = vpop.f32.mrb[0].mxu0
    %v154 = vadd.f32 0.0, %v153
    %v155 = vpop.f32.mrb[0].mxu0
    %156 = vmatprep.mubr.f32.mxu0 0.0
    %157 = vmatmul.mubr.f32.gmra.mrb[0].mxu0 %v69
    %v158 = vpop.f32.mrb[0].mxu0
    %v159 = vadd.f32 0.0, %v158
    %v160 = vpop.f32.mrb[0].mxu0
    %161 = vdwg.mxu0
    %v162 = vmul.f32 %v144, 2.0
    %v163 = vmul.f32 %v149, 2.0
    %v164 = vmul.f32 %v154, 2.0
    %v165 = vmul.f32 %v159, 2.0
    %v166 = vsub.f32 %v162, %v49
    %v167 = vsub.f32 %v163, %v52
    %v168 = vsub.f32 %v164, %v55
    %v169 = vsub.f32 %v165, %v58
    %v171 = vlaneseq
    %v172 = vshrl.u32 %v171, 7
    %v173 = vsub.s32 0, %v172
    %v174 = vrot.slane %v41, %v173
    %v176 = vsub.f32 %v166, %v174
    %v177 = vsub.f32 %v167, %v174
    %v178 = vsub.f32 %v168, %v174
    %v179 = vsub.f32 %v169, %v174
    %v180 = vstv %s34
    %v181 = vmul.f32 %v176, %v180
    %v182 = vmul.f32 %v177, %v180
    %v183 = vmul.f32 %v178, %v180
    %v184 = vmul.f32 %v179, %v180
    %vm185 = vcmask 130048
    %186 = vst.msk [vmem:[#allocation5] sm:$0xff] %vm185, %v181
    %187 = vst.msk [vmem:[#allocation5 + $0x8] sm:$0xff] %vm185, %v182
    %188 = vst.msk [vmem:[#allocation5 + $0x10] sm:$0xff] %vm185, %v183
    %189 = vst.msk [vmem:[#allocation5 + $0x18] sm:$0xff] %vm185, %v184
    %v190 = vsel %vm185, %v181, -inf
    %191 = vmax.xlane.f32.xlu0 %v190
    %v192 = vpop.xlane.xlu0 %191
    %v193 = vsel %vm185, %v182, -inf
    %194 = vmax.xlane.f32.xlu0 %v193
    %v195 = vpop.xlane.xlu0 %194
    %v196 = vsel %vm185, %v183, -inf
    %197 = vmax.xlane.f32.xlu0 %v196
    %v198 = vpop.xlane.xlu0 %197
    %v199 = vsel %vm185, %v184, -inf
    %200 = vmax.xlane.f32.xlu0 %v199
    %v201 = vpop.xlane.xlu0 %200
    %v202 = vlaneseq
    %v203 = vand.u32 %v202, 127
    %vm204 = vcmp.eq.f32.partialorder %v181, %v192
    %vm205 = vcmp.eq.f32.partialorder %v182, %v195
    %vm206 = vcmp.eq.f32.partialorder %v183, %v198
    %vm207 = vcmp.eq.f32.partialorder %v184, %v201
    %v208 = vsel %vm204, %v203, 16
    %v209 = vsel %vm205, %v203, 16
    %v210 = vsel %vm206, %v203, 16
    %v211 = vsel %vm207, %v203, 16
    %v212 = vsel %vm185, %v208, 2147483647
    %v213 = vand.u32 %v212, 65535
    %v214 = vshra.s32 %v212, 16
    %v215 = vcvt.s32.f32 %v213
    %v216 = vcvt.s32.f32 %v214
    %217 = vmin.xlane.f32.xlu0 %v216
    %v218 = vpop.xlane.xlu0 %217
    %vm219 = vcmp.eq.f32.partialorder %v216, %v218
    %v220 = vsel %vm219, %v215, inf
    %221 = vmin.xlane.f32.xlu0 %v220
    %v222 = vpop.xlane.xlu0 %221
    %v223 = vcvt.f32.s32 %v222
    %v224 = vcvt.f32.s32 %v218
    %v225 = vshll.u32 %v224, 16
    %v226 = vadd.s32 %v225, %v223
    %v227 = vsel %vm185, %v209, 2147483647
    %v228 = vand.u32 %v227, 65535
    %v229 = vshra.s32 %v227, 16
    %v230 = vcvt.s32.f32 %v228
    %v231 = vcvt.s32.f32 %v229
    %232 = vmin.xlane.f32.xlu0 %v231
    %v233 = vpop.xlane.xlu0 %232
    %vm234 = vcmp.eq.f32.partialorder %v231, %v233
    %v235 = vsel %vm234, %v230, inf
    %236 = vmin.xlane.f32.xlu0 %v235
    %v237 = vpop.xlane.xlu0 %236
    %v238 = vcvt.f32.s32 %v237
    %v239 = vcvt.f32.s32 %v233
    %v240 = vshll.u32 %v239, 16
    %v241 = vadd.s32 %v240, %v238
    %v242 = vsel %vm185, %v210, 2147483647
    %v243 = vand.u32 %v242, 65535
    %v244 = vshra.s32 %v242, 16
    %v245 = vcvt.s32.f32 %v243
    %v246 = vcvt.s32.f32 %v244
    %247 = vmin.xlane.f32.xlu0 %v246
    %v248 = vpop.xlane.xlu0 %247
    %vm249 = vcmp.eq.f32.partialorder %v246, %v248
    %v250 = vsel %vm249, %v245, inf
    %251 = vmin.xlane.f32.xlu0 %v250
    %v252 = vpop.xlane.xlu0 %251
    %v253 = vcvt.f32.s32 %v252
    %v254 = vcvt.f32.s32 %v248
    %v255 = vshll.u32 %v254, 16
    %v256 = vadd.s32 %v255, %v253
    %v257 = vsel %vm185, %v211, 2147483647
    %v258 = vand.u32 %v257, 65535
    %v259 = vshra.s32 %v257, 16
    %v260 = vcvt.s32.f32 %v258
    %v261 = vcvt.s32.f32 %v259
    %262 = vmin.xlane.f32.xlu0 %v261
    %v263 = vpop.xlane.xlu0 %262
    %vm264 = vcmp.eq.f32.partialorder %v261, %v263
    %v265 = vsel %vm264, %v260, inf
    %266 = vmin.xlane.f32.xlu0 %v265
    %v267 = vpop.xlane.xlu0 %266
    %v268 = vcvt.f32.s32 %v267
    %v269 = vcvt.f32.s32 %v263
    %v270 = vshll.u32 %v269, 16
    %v271 = vadd.s32 %v270, %v268
    %vm272 = vcmp.eq.s32.totalorder %v203, %v226
    %vm273 = vcmp.eq.s32.totalorder %v203, %v241
    %vm274 = vcmp.eq.s32.totalorder %v203, %v256
    %vm275 = vcmp.eq.s32.totalorder %v203, %v271
    %v276 = vsel %vm272, 1, 0
    %v277 = vsel %vm273, 1, 0
    %v278 = vsel %vm274, 1, 0
    %v279 = vsel %vm275, 1, 0
    %v280 = vcvt.s32.f32 %v276
    %v281 = vcvt.s32.f32 %v277
    %v282 = vcvt.s32.f32 %v278
    %v283 = vcvt.s32.f32 %v279
    %v285 = vsel %vm185, %v280, 0
    %v288 = vsel %vm185, %v281, 0
    %v291 = vsel %vm185, %v282, 0
    %v294 = vsel %vm185, %v283, 0
    %296 = vmatprep.subr.mxu0 0.0
    %297 = vmatpush1.msra.mxu0 %v39
    %298 = vmatprep.subr.mxu0 0.0
    %299 = vmatpush1.msra.mxu0 %v40
    %300 = vmatprep.subr.mxu0 0.0
    %301 = vmatpush1.msra.mxu0 0.0
    %302 = vmatprep.subr.mxu0 0.0
    %303 = vmatpush1.msra.mxu0 0.0
    %304 = vmatprep.subr.mxu0 0.0
    %305 = vmatpush1.msra.mxu0 0.0
    %306 = vmatprep.subr.mxu0 0.0
    %307 = vmatpush1.msra.mxu0 0.0
    %308 = vmatprep.subr.mxu0 0.0
    %309 = vmatpush1.msra.mxu0 0.0
    %310 = vmatprep.subr.mxu0 0.0
    %311 = vmatpush1.msra.mxu0 0.0
    %312 = vmatprep.subr.mxu0 0.0
    %313 = vmatpush1.msra.mxu0 0.0
    %314 = vmatprep.subr.mxu0 0.0
    %315 = vmatpush1.msra.mxu0 0.0
    %316 = vmatprep.subr.mxu0 0.0
    %317 = vmatpush1.msra.mxu0 0.0
    %318 = vmatprep.subr.mxu0 0.0
    %319 = vmatpush1.msra.mxu0 0.0
    %320 = vmatprep.subr.mxu0 0.0
    %321 = vmatpush1.msra.mxu0 0.0
    %322 = vmatprep.subr.mxu0 0.0
    %323 = vmatpush1.msra.mxu0 0.0
    %324 = vmatprep.subr.mxu0 0.0
    %325 = vmatpush1.msra.mxu0 0.0
    %326 = vmatprep.subr.mxu0 0.0
    %327 = vmatpush1.msra.mxu0 0.0
    %328 = vmatprep.subr.mxu0 0.0
    %329 = vmatpush1.msra.mxu0 0.0
    %330 = vmatprep.subr.mxu0 0.0
    %331 = vmatpush1.msra.mxu0 0.0
    %332 = vmatprep.subr.mxu0 0.0
    %333 = vmatpush1.msra.mxu0 0.0
    %334 = vmatprep.subr.mxu0 0.0
    %335 = vmatpush1.msra.mxu0 0.0
    %336 = vmatprep.subr.mxu0 0.0
    %337 = vmatpush1.msra.mxu0 0.0
    %338 = vmatprep.subr.mxu0 0.0
    %339 = vmatpush1.msra.mxu0 0.0
    %340 = vmatprep.subr.mxu0 0.0
    %341 = vmatpush1.msra.mxu0 0.0
    %342 = vmatprep.subr.mxu0 0.0
    %343 = vmatpush1.msra.mxu0 0.0
    %344 = vmatprep.subr.mxu0 0.0
    %345 = vmatpush1.msra.mxu0 0.0
    %346 = vmatprep.subr.mxu0 0.0
    %347 = vmatpush1.msra.mxu0 0.0
    %348 = vmatprep.subr.mxu0 0.0
    %349 = vmatpush1.msra.mxu0 0.0
    %350 = vmatprep.subr.mxu0 0.0
    %351 = vmatpush1.msra.mxu0 0.0
    %352 = vmatprep.subr.mxu0 0.0
    %353 = vmatpush1.msra.mxu0 0.0
    %354 = vmatprep.subr.mxu0 0.0
    %355 = vmatpush1.msra.mxu0 0.0
    %356 = vmatprep.subr.mxu0 0.0
    %357 = vmatpush1.msra.mxu0 0.0
    %358 = vmatprep.subr.mxu0 0.0
    %359 = vmatpush1.msra.mxu0 0.0
    %360 = vmatprep.mubr.f32.mxu0 0.0
    %361 = vmatmul.mubr.f32.gmra.mrb[0].mxu0 %v285
    %v362 = vpop.f32.mrb[0].mxu0
    %v363 = vadd.f32 0.0, %v362
    %v364 = vpop.f32.mrb[0].mxu0
    %365 = vmatprep.mubr.f32.mxu0 0.0
    %366 = vmatmul.mubr.f32.gmra.mrb[0].mxu0 %v288
    %v367 = vpop.f32.mrb[0].mxu0
    %v368 = vadd.f32 0.0, %v367
    %v369 = vpop.f32.mrb[0].mxu0
    %370 = vmatprep.mubr.f32.mxu0 0.0
    %371 = vmatmul.mubr.f32.gmra.mrb[0].mxu0 %v291
    %v372 = vpop.f32.mrb[0].mxu0
    %v373 = vadd.f32 0.0, %v372
    %v374 = vpop.f32.mrb[0].mxu0
    %375 = vmatprep.mubr.f32.mxu0 0.0
    %376 = vmatmul.mubr.f32.gmra.mrb[0].mxu0 %v294
    %v377 = vpop.f32.mrb[0].mxu0
    %v378 = vadd.f32 0.0, %v377
    %v379 = vpop.f32.mrb[0].mxu0
    %380 = vdwg.mxu0
    %381 = vst.msk [vmem:[#allocation6] sm:$0xff] %vm46, %v363
    %382 = vst.msk [vmem:[#allocation6 + $0x8] sm:$0xff] %vm46, %v368
    %383 = vst.msk [vmem:[#allocation6 + $0x10] sm:$0xff] %vm46, %v373
    %384 = vst.msk [vmem:[#allocation6 + $0x18] sm:$0xff] %vm46, %v378
    // Predicated region
    $region22: #{gaussian_vq_forward.1} parent=1 // pred_check
      _
    $region23: #{gaussian_vq_forward.1} parent=1 // pred_check_branch
      %386 = sbr.rel (0) target = $region25
    $region24: #{gaussian_vq_forward.1} parent=1 // pred_region
      %s388 = ssub.s32 512, 512
      %389 = vsyncadd [#allocation3], %s388
      %s390 = sshll.u32 [#allocation5], 4
      %s391 = int_to_ptr.vmem [resolvable:$true] %s390
      %396 = dma.vmem_to_hbm [thread:$0]  %s391, 512, %s4, [#allocation3], 128, 128, 8
    $region25: #{gaussian_vq_forward.1} parent=1 // pred_fallthru
      _
    // Predicated region
    $region26: #{gaussian_vq_forward.1} parent=1 // pred_check
      _
    $region27: #{gaussian_vq_forward.1} parent=1 // pred_check_branch
      %398 = sbr.rel (0) target = $region29
    $region28: #{gaussian_vq_forward.1} parent=1 // pred_region
      %s400 = ssub.s32 512, 512
      %401 = vsyncadd [#allocation7], %s400
      %s402 = sshll.u32 [#allocation6], 4
      %s403 = int_to_ptr.vmem [resolvable:$true] %s402
      %408 = dma.vmem_to_hbm [thread:$0]  %s403, 512, %s5, [#allocation7], 128, 128, 8
    $region29: #{gaussian_vq_forward.1} parent=1 // pred_fallthru
      _
    // Predicated region
    $region30: #{gaussian_vq_forward.1} parent=1 // pred_check
      _
    $region31: #{gaussian_vq_forward.1} parent=1 // pred_check_branch
      %410 = sbr.rel (0) target = $region33
    $region32: #{gaussian_vq_forward.1} parent=1 // pred_region
      %411 = dma.done [#allocation3], 512
    $region33: #{gaussian_vq_forward.1} parent=1 // pred_fallthru
      _
    // Predicated region
    $region34: #{gaussian_vq_forward.1} parent=1 // pred_check
      _
    $region35: #{gaussian_vq_forward.1} parent=1 // pred_check_branch
      %413 = sbr.rel (0) target = $region37
    $region36: #{gaussian_vq_forward.1} parent=1 // pred_region
      %414 = dma.done [#allocation7], 512
    $region37: #{gaussian_vq_forward.1} parent=1 // pred_fallthru
      _
    %415 = vsyncpa [#allocation3], 1
    %416 = vsyncpa [#allocation7], 1
    %417 = vsyncpa [#allocation4], 1

</llo_original>
